<compile_context>
chip_gen: v7x
topology: tpu7x:2x2x1
jax: 0.10.0
libtpu: 0.0.40
codegen_flags: <defaults>
</compile_context>

<pallas_src>
import functools

import jax
import jax.numpy as jnp
from jax.experimental import pallas as pl
from jax.experimental.pallas import tpu as pltpu

LANE = 128  # TPU lane width; the hidden activations live at this width.


def _round_up(x, m):
    return ((x + m - 1) // m) * m


def _cdiv(a, b):
    return -(-a // b)


# ----------------------------------------------------------------------------
# Pallas kernel: 3-layer MLP (matmul + bias + ReLU, twice; matmul + bias +
# exact sigmoid).  Zero padding is self-consistent: padded input lanes hit zero
# weight rows, padded hidden columns stay exactly 0 through ReLU, and the
# output is exactly num_control_params lanes wide.
# ----------------------------------------------------------------------------
def _mlp_kernel(x_ref, w1_ref, w2_ref, w3_ref, bh_ref, bo_ref, o_ref):
    wdt = w1_ref.dtype                         # f32, or bf16 on v5e
    bh = bh_ref[...]                           # (2, 128) f32 hidden biases

    x = x_ref[...]                             # (TB, nc_pad)  nc_pad ~ 8
    h = jnp.dot(x.astype(wdt), w1_ref[...],
                preferred_element_type=jnp.float32) + bh[0:1, :]
    h = jnp.maximum(h, 0.0)                    # ReLU
    h = jnp.dot(h.astype(wdt), w2_ref[...],
                preferred_element_type=jnp.float32) + bh[1:2, :]
    h = jnp.maximum(h, 0.0)                    # ReLU
    y = jnp.dot(h.astype(wdt), w3_ref[...],
                preferred_element_type=jnp.float32) + bo_ref[...]

    # Exact sigmoid: exp on the EUP, one VPU divide -- both have slack here.
    o_ref[...] = (1.0 / (1.0 + jnp.exp(-y))).astype(o_ref.dtype)


# ----------------------------------------------------------------------------
# Wrapper
# ----------------------------------------------------------------------------
@functools.partial(jax.jit, static_argnames=("num_control_params", "block_b"))
def static_cond_controller_forward(controls, packed_params, num_control_params,
                                   block_b=1024):
    """controls: (bs, num_controls) -> (bs, num_control_params, 1) float32."""
    w1s, w2s, w3s, bh, bo = packed_params
    bs, chs = controls.shape
    nc_pad = w1s.shape[0]                      # padded num_controls (multiple of 8)
    hid = w1s.shape[1]                         # hidden width, padded to LANE
    np_out = w3s.shape[1]                      # == num_control_params (unpadded)

    # Explicit shape validation (review correctness concern).
    if chs > nc_pad:
        raise ValueError(f"controls has {chs} channels but params were packed "
                         f"for <= {nc_pad}")
    if np_out != num_control_params:
        raise ValueError("num_control_params does not match packed W3")
    if hid != LANE or w2s.shape != (LANE, LANE) or w3s.shape[0] != LANE:
        raise ValueError("packed hidden width must be LANE (128)")

    # Batch tile: bound padding waste and, for larger batches, keep >= 2 grid
    # steps so the "parallel" axis can shard across v7x's two TensorCores.
    n_steps = max(1, _cdiv(bs, block_b))
    if bs > 64 and n_steps < 2:
        n_steps = 2
    tb = _round_up(_cdiv(bs, n_steps), 8)      # sublane-aligned tile
    grid = _cdiv(bs, tb)
    b_pad = grid * tb                          # padding < tb (+ sublane round-up)

    # Zero-pad controls to (b_pad, nc_pad) -- only ~8 lanes wide, cheap.
    x = jnp.zeros((b_pad, nc_pad), jnp.float32).at[:bs, :chs].set(
        controls.astype(jnp.float32))

    out = pl.pallas_call(
        _mlp_kernel,
        out_shape=jax.ShapeDtypeStruct((b_pad, np_out), jnp.float32),
        grid_spec=pltpu.PrefetchScalarGridSpec(
            num_scalar_prefetch=0,
            grid=(grid,),
            in_specs=[
                pl.BlockSpec((tb, nc_pad), lambda i: (i, 0)),      # controls tile
                pl.BlockSpec((nc_pad, hid), lambda i: (0, 0)),     # W1 (narrow)
                pl.BlockSpec((hid, hid), lambda i: (0, 0)),        # W2
                pl.BlockSpec((hid, np_out), lambda i: (0, 0)),     # W3 (narrow out)
                pl.BlockSpec((2, hid), lambda i: (0, 0)),          # hidden biases
                pl.BlockSpec((1, np_out), lambda i: (0, 0)),       # output bias
            ],
            out_specs=pl.BlockSpec((tb, np_out), lambda i: (i, 0)),
        ),
        compiler_params=pltpu.CompilerParams(
            dimension_semantics=("parallel",),   # megacore-shardable batch axis
            vmem_limit_bytes=8 * 1024 * 1024,    # live VMEM is well under 1 MiB
        ),
    )(x, w1s, w2s, w3s, bh, bo)

    # Drop batch padding only (lane dim is already exact), then .unsqueeze(-1).
    return out[:bs, :, None]


# ----------------------------------------------------------------------------
# Parameter init (PyTorch nn.Linear default: U(-1/sqrt(fan_in), +bound)) and
# packing into the padded slabs the kernel consumes.
# ----------------------------------------------------------------------------
def init_params(key, num_controls, num_control_params, num_layers=3, hidden_dim=16):
    assert num_layers == 3  # kernel is written for the default 3-layer MLP
    dims = [num_controls, hidden_dim, hidden_dim, num_control_params]
    params = []
    for i in range(num_layers):
        fan_in, fan_out = dims[i], dims[i + 1]
        key, kw, kb = jax.random.split(key, 3)
        bound = 1.0 / jnp.sqrt(fan_in)
        # stored as (in_dim, out_dim) == PyTorch weight.T
        w = jax.random.uniform(kw, (fan_in, fan_out), jnp.float32, -bound, bound)
        b = jax.random.uniform(kb, (1, fan_out), jnp.float32, -bound, bound)
        params += [w, b]
    return tuple(params)


def pack_params(params, dtype=jnp.float32):
    """Pack (w1,b1,w2,b2,w3,b3) into the padded slabs the kernel consumes.

    Weights (zero-padded, cast to `dtype`; use jnp.bfloat16 on v5e where f32
    MXU is emulated -- accumulation in the kernel stays f32 either way):
        w1: (nc_pad, 128)   w2: (128, 128)   w3: (128, num_control_params)
    Biases stay float32:
        b_hidden: (2, 128)  b_out: (1, num_control_params)
    """
    w1, b1, w2, b2, w3, b3 = params
    num_controls, hidden = w1.shape
    num_control_params = w3.shape[1]
    if num_controls > LANE or hidden > LANE or num_control_params > LANE:
        raise ValueError("num_controls, hidden_dim and num_control_params must "
                         f"all be <= {LANE}")

    nc_pad = max(8, _round_up(num_controls, 8))
    w1s = jnp.zeros((nc_pad, LANE), dtype).at[:num_controls, :hidden].set(
        w1.astype(dtype))
    w2s = jnp.zeros((LANE, LANE), dtype).at[:hidden, :hidden].set(w2.astype(dtype))
    w3s = jnp.zeros((LANE, num_control_params), dtype).at[:hidden, :].set(
        w3.astype(dtype))
    bh = (jnp.zeros((2, LANE), jnp.float32)
          .at[0, :hidden].set(b1[0].astype(jnp.float32))
          .at[1, :hidden].set(b2[0].astype(jnp.float32)))
    bo = b3.astype(jnp.float32).reshape(1, num_control_params)
    return w1s, w2s, w3s, bh, bo


if __name__ == "__main__":
    # StaticCondController(num_controls=4, num_control_params=8,
    #                      num_layers=3, hidden_dim=16)
    num_controls = 4
    num_control_params = 8
    hidden_dim = 16
    bs = 2

    key = jax.random.PRNGKey(0)
    key, k_in = jax.random.split(key)
    controls = jax.random.uniform(k_in, (bs, num_controls), jnp.float32)  # (2, 4)

    params = init_params(key, num_controls, num_control_params,
                         num_layers=3, hidden_dim=hidden_dim)

    def reference(ctrl):
        w1, b1, w2, b2, w3, b3 = params
        h = jnp.maximum(ctrl @ w1 + b1, 0.0)
        h = jnp.maximum(h @ w2 + b2, 0.0)
        return jax.nn.sigmoid(h @ w3 + b3)[..., None]

    # ---- f32 path (exact) at the production-like tiny batch -----------------
    packed = pack_params(params)
    out = static_cond_controller_forward(controls, packed, num_control_params)
    out = jax.block_until_ready(out)
    assert out.shape == (bs, num_control_params, 1), out.shape
    assert bool(jnp.all((out >= 0.0) & (out <= 1.0)))  # sigmoid range sanity
    ref = reference(controls)
    assert bool(jnp.allclose(out, ref, atol=1e-5, rtol=1e-5)), (
        float(jnp.max(jnp.abs(out - ref))))

    # ---- larger batch exercises the multi-step "parallel" grid + padding ----
    key, k_big = jax.random.split(key)
    big = jax.random.uniform(k_big, (200, num_controls), jnp.float32)
    out_big = jax.block_until_ready(
        static_cond_controller_forward(big, packed, num_control_params))
    assert out_big.shape == (200, num_control_params, 1), out_big.shape
    ref_big = reference(big)
    assert bool(jnp.allclose(out_big, ref_big, atol=1e-5, rtol=1e-5)), (
        float(jnp.max(jnp.abs(out_big - ref_big))))

    # ---- bf16 weight packing (v5e-oriented); accumulation stays f32 ---------
    packed_bf16 = pack_params(params, dtype=jnp.bfloat16)
    out_bf16 = jax.block_until_ready(
        static_cond_controller_forward(controls, packed_bf16, num_control_params))
    assert bool(jnp.allclose(out_bf16, ref, atol=2e-2, rtol=2e-2)), (
        float(jnp.max(jnp.abs(out_bf16 - ref))))

    print("KERNEL_OK")
</pallas_src>

<mosaic_0001>
module attributes {stable_mosaic.version = 11 : i64} {
  func.func @_mlp_kernel(%arg0: i32, %arg1: memref<8x8xf32, #tpu.memory_space<vmem>>, %arg2: memref<8x128xf32, #tpu.memory_space<vmem>>, %arg3: memref<128x128xf32, #tpu.memory_space<vmem>>, %arg4: memref<128x8xf32, #tpu.memory_space<vmem>>, %arg5: memref<2x128xf32, #tpu.memory_space<vmem>>, %arg6: memref<1x8xf32, #tpu.memory_space<vmem>>, %arg7: memref<8x8xf32, #tpu.memory_space<vmem>>) attributes {dimension_semantics = [#tpu.dimension_semantics<parallel>], iteration_bounds = array<i64: 1>, scalar_prefetch = 0 : i64, scratch_operands = 0 : i64, tpu.core_type = #tpu.core_type<tc>, window_params = [{transform_indices = @transform_0, window_bounds = array<i64: 8, 8>}, {pipeline_mode = #tpu.pipeline_mode<synchronous>, transform_indices = @transform_1, window_bounds = array<i64: 8, 128>}, {pipeline_mode = #tpu.pipeline_mode<synchronous>, transform_indices = @transform_2, window_bounds = array<i64: 128, 128>}, {pipeline_mode = #tpu.pipeline_mode<synchronous>, transform_indices = @transform_3, window_bounds = array<i64: 128, 8>}, {pipeline_mode = #tpu.pipeline_mode<synchronous>, transform_indices = @transform_4, window_bounds = array<i64: 2, 128>}, {pipeline_mode = #tpu.pipeline_mode<synchronous>, transform_indices = @transform_5, window_bounds = array<i64: 1, 8>}, {transform_indices = @transform_6, window_bounds = array<i64: 8, 8>}]} {
    %c0 = arith.constant 0 : index
    %c0_0 = arith.constant 0 : index
    %0 = vector.load %arg5[%c0, %c0_0] : memref<2x128xf32, #tpu.memory_space<vmem>>, vector<2x128xf32>
    %c0_1 = arith.constant 0 : index
    %c0_2 = arith.constant 0 : index
    %1 = vector.load %arg1[%c0_1, %c0_2] : memref<8x8xf32, #tpu.memory_space<vmem>>, vector<8x8xf32>
    %c0_3 = arith.constant 0 : index
    %c0_4 = arith.constant 0 : index
    %2 = vector.load %arg2[%c0_3, %c0_4] : memref<8x128xf32, #tpu.memory_space<vmem>>, vector<8x128xf32>
    %cst = arith.constant dense<0.000000e+00> : vector<8x128xf32>
    %3 = tpu.matmul %1, %2, %cst {dimension_numbers = #tpu.dot_dimension_numbers<[1], [0], [0], [1], [0, 0, 1, 1], [], []>} : vector<8x8xf32>, vector<8x128xf32>, vector<8x128xf32> -> vector<8x128xf32>
    %4 = vector.extract_strided_slice %0 {offsets = [0, 0], sizes = [1, 128], strides = [1, 1]} : vector<2x128xf32> to vector<1x128xf32>
    %5 = vector.broadcast %4 : vector<1x128xf32> to vector<8x128xf32>
    %6 = arith.addf %3, %5 : vector<8x128xf32>
    %cst_5 = arith.constant 0.000000e+00 : f32
    %7 = vector.broadcast %cst_5 : f32 to vector<8x128xf32>
    %8 = arith.maximumf %6, %7 : vector<8x128xf32>
    %c0_6 = arith.constant 0 : index
    %c0_7 = arith.constant 0 : index
    %9 = vector.load %arg3[%c0_6, %c0_7] : memref<128x128xf32, #tpu.memory_space<vmem>>, vector<128x128xf32>
    %cst_8 = arith.constant dense<0.000000e+00> : vector<8x128xf32>
    %10 = tpu.matmul %8, %9, %cst_8 {dimension_numbers = #tpu.dot_dimension_numbers<[1], [0], [0], [1], [0, 0, 1, 1], [], []>} : vector<8x128xf32>, vector<128x128xf32>, vector<8x128xf32> -> vector<8x128xf32>
    %11 = vector.extract_strided_slice %0 {offsets = [1, 0], sizes = [1, 128], strides = [1, 1]} : vector<2x128xf32> to vector<1x128xf32>
    %12 = vector.broadcast %11 : vector<1x128xf32> to vector<8x128xf32>
    %13 = arith.addf %10, %12 : vector<8x128xf32>
    %cst_9 = arith.constant 0.000000e+00 : f32
    %14 = vector.broadcast %cst_9 : f32 to vector<8x128xf32>
    %15 = arith.maximumf %13, %14 : vector<8x128xf32>
    %c0_10 = arith.constant 0 : index
    %c0_11 = arith.constant 0 : index
    %16 = vector.load %arg4[%c0_10, %c0_11] : memref<128x8xf32, #tpu.memory_space<vmem>>, vector<128x8xf32>
    %cst_12 = arith.constant dense<0.000000e+00> : vector<8x8xf32>
    %17 = tpu.matmul %15, %16, %cst_12 {dimension_numbers = #tpu.dot_dimension_numbers<[1], [0], [0], [1], [0, 0, 1, 1], [], []>} : vector<8x128xf32>, vector<128x8xf32>, vector<8x8xf32> -> vector<8x8xf32>
    %c0_13 = arith.constant 0 : index
    %c0_14 = arith.constant 0 : index
    %18 = vector.load %arg6[%c0_13, %c0_14] : memref<1x8xf32, #tpu.memory_space<vmem>>, vector<1x8xf32>
    %19 = vector.broadcast %18 : vector<1x8xf32> to vector<8x8xf32>
    %20 = arith.addf %17, %19 : vector<8x8xf32>
    %cst_15 = arith.constant 0.000000e+00 : f32
    %21 = vector.broadcast %cst_15 : f32 to vector<8x8xf32>
    %22 = arith.subf %21, %20 : vector<8x8xf32>
    %23 = math.exp %22 : vector<8x8xf32>
    %cst_16 = arith.constant 1.000000e+00 : f32
    %24 = vector.broadcast %cst_16 : f32 to vector<8x8xf32>
    %25 = arith.addf %24, %23 : vector<8x8xf32>
    %cst_17 = arith.constant 1.000000e+00 : f32
    %26 = vector.broadcast %cst_17 : f32 to vector<8x8xf32>
    %27 = arith.divf %26, %25 : vector<8x8xf32>
    %c0_18 = arith.constant 0 : index
    %c0_19 = arith.constant 0 : index
    %28 = vector.load %arg7[%c0_18, %c0_19] : memref<8x8xf32, #tpu.memory_space<vmem>>, vector<8x8xf32>
    tpu.vector_store %arg7[%c0_18, %c0_19], %27 {strides = array<i32>} : memref<8x8xf32, #tpu.memory_space<vmem>>, vector<8x8xf32>,
    return
  }
  func.func @transform_0(%arg0: i32) -> (i32, i32) {
    %c0_i32 = arith.constant 0 : i32
    %c0_i32_0 = arith.constant 0 : i32
    return %arg0, %c0_i32 : i32, i32
  }
  func.func @transform_1(%arg0: i32) -> (i32, i32) {
    %c0_i32 = arith.constant 0 : i32
    %c0_i32_0 = arith.constant 0 : i32
    %c0_i32_1 = arith.constant 0 : i32
    return %c0_i32, %c0_i32_0 : i32, i32
  }
  func.func @transform_2(%arg0: i32) -> (i32, i32) {
    %c0_i32 = arith.constant 0 : i32
    %c0_i32_0 = arith.constant 0 : i32
    %c0_i32_1 = arith.constant 0 : i32
    return %c0_i32, %c0_i32_0 : i32, i32
  }
  func.func @transform_3(%arg0: i32) -> (i32, i32) {
    %c0_i32 = arith.constant 0 : i32
    %c0_i32_0 = arith.constant 0 : i32
    %c0_i32_1 = arith.constant 0 : i32
    return %c0_i32, %c0_i32_0 : i32, i32
  }
  func.func @transform_4(%arg0: i32) -> (i32, i32) {
    %c0_i32 = arith.constant 0 : i32
    %c0_i32_0 = arith.constant 0 : i32
    %c0_i32_1 = arith.constant 0 : i32
    return %c0_i32, %c0_i32_0 : i32, i32
  }
  func.func @transform_5(%arg0: i32) -> (i32, i32) {
    %c0_i32 = arith.constant 0 : i32
    %c0_i32_0 = arith.constant 0 : i32
    %c0_i32_1 = arith.constant 0 : i32
    return %c0_i32, %c0_i32_0 : i32, i32
  }
  func.func @transform_6(%arg0: i32) -> (i32, i32) {
    %c0_i32 = arith.constant 0 : i32
    %c0_i32_0 = arith.constant 0 : i32
    return %arg0, %c0_i32 : i32, i32
  }
}

</mosaic_0001>

<llo_original>
// kernel: static_cond_controller_forward.1
$region0: #{static_cond_controller_forward.1}
  #allocation0 [shape = 'u32[]', space=smem, size = 0x4, offset = 0x4, fixed_abs, tag = 'smem constant byte address 0x4 - core index']
  #allocation1 [shape = 'u32[144,128]{1,0:T(1,128)}', space=vmem, size = 0x12000, scoped, tag = 'internal scratch']
  %s0 = inlined_call_operand.vmem [shape: f32[8,8], index: 0, kind: input, shape index: {}]
  %s1 = inlined_call_operand.vmem [shape: f32[8,128], index: 1, kind: input, shape index: {}]
  %s2 = inlined_call_operand.vmem [shape: f32[128,128], index: 2, kind: input, shape index: {}]
  %s3 = inlined_call_operand.vmem [shape: f32[128,8], index: 3, kind: input, shape index: {}]
  %s4 = inlined_call_operand.vmem [shape: f32[2,128], index: 4, kind: input, shape index: {}]
  %s5 = inlined_call_operand.vmem [shape: f32[1,8], index: 5, kind: input, shape index: {}]
  %s6 = inlined_call_operand.vmem [shape: f32[8,8], index: 6, kind: output, shape index: {}]
  %s7 = sld [smem:[#allocation0]]
  $region34: #{static_cond_controller_forward.1} parent=0
    _
  %s9 = ssub.s32 1, %s7
  %s10 = scalar_select 0, %s9, %s7
  // Predicated region
  $region2: #{static_cond_controller_forward.1} parent=0 // pred_check
    _
  $region3: #{static_cond_controller_forward.1} parent=0 // pred_check_branch
    %12 = sbr.rel (0) target = $region5
  $region4: #{static_cond_controller_forward.1} parent=0 // pred_region
    _
  $region5: #{static_cond_controller_forward.1} parent=0 // pred_fallthru
    _
  // Predicated region
  $region6: #{static_cond_controller_forward.1} parent=0 // pred_check
    _
  $region7: #{static_cond_controller_forward.1} parent=0 // pred_check_branch
    %14 = sbr.rel (0) target = $region9
  $region8: #{static_cond_controller_forward.1} parent=0 // pred_region
    _
  $region9: #{static_cond_controller_forward.1} parent=0 // pred_fallthru
    _
  // Predicated region
  $region10: #{static_cond_controller_forward.1} parent=0 // pred_check
    _
  $region11: #{static_cond_controller_forward.1} parent=0 // pred_check_branch
    %16 = sbr.rel (0) target = $region13
  $region12: #{static_cond_controller_forward.1} parent=0 // pred_region
    _
  $region13: #{static_cond_controller_forward.1} parent=0 // pred_fallthru
    _
  // Predicated region
  $region14: #{static_cond_controller_forward.1} parent=0 // pred_check
    _
  $region15: #{static_cond_controller_forward.1} parent=0 // pred_check_branch
    %18 = sbr.rel (0) target = $region17
  $region16: #{static_cond_controller_forward.1} parent=0 // pred_region
    _
  $region17: #{static_cond_controller_forward.1} parent=0 // pred_fallthru
    _
  // Predicated region
  $region18: #{static_cond_controller_forward.1} parent=0 // pred_check
    _
  $region19: #{static_cond_controller_forward.1} parent=0 // pred_check_branch
    %20 = sbr.rel (0) target = $region21
  $region20: #{static_cond_controller_forward.1} parent=0 // pred_region
    _
  $region21: #{static_cond_controller_forward.1} parent=0 // pred_fallthru
    _
  // Predicated region
  $region22: #{static_cond_controller_forward.1} parent=0 // pred_check
    _
  $region23: #{static_cond_controller_forward.1} parent=0 // pred_check_branch
    %22 = sbr.rel (0) target = $region25
  $region24: #{static_cond_controller_forward.1} parent=0 // pred_region
    _
  $region25: #{static_cond_controller_forward.1} parent=0 // pred_fallthru
    _
  %v23 = vld [vmem:[%s4] sm:$0x3]
  %v24 = vld [vmem:[%s0] sm:$0xff]
  %v25 = vld [vmem:[%s1] sm:$0xff]
  %v26 = vlaneseq
  %v27 = vshrl.u32 %v26, 7
  %v28 = vsub.s32 0, %v27
  %v29 = vrot.slane %v23, %v28
  %vm30 = vcmask 64512
  %v32 = vsel %vm30, %v24, 0
  %34 = vmatprep.subr.mxu0 0.0
  %35 = vmatpush1.msra.mxu0 %v25
  %36 = vmatprep.subr.mxu0 0.0
  %37 = vmatpush1.msra.mxu0 0.0
  %38 = vmatprep.subr.mxu0 0.0
  %39 = vmatpush1.msra.mxu0 0.0
  %40 = vmatprep.subr.mxu0 0.0
  %41 = vmatpush1.msra.mxu0 0.0
  %42 = vmatprep.subr.mxu0 0.0
  %43 = vmatpush1.msra.mxu0 0.0
  %44 = vmatprep.subr.mxu0 0.0
  %45 = vmatpush1.msra.mxu0 0.0
  %46 = vmatprep.subr.mxu0 0.0
  %47 = vmatpush1.msra.mxu0 0.0
  %48 = vmatprep.subr.mxu0 0.0
  %49 = vmatpush1.msra.mxu0 0.0
  %50 = vmatprep.subr.mxu0 0.0
  %51 = vmatpush1.msra.mxu0 0.0
  %52 = vmatprep.subr.mxu0 0.0
  %53 = vmatpush1.msra.mxu0 0.0
  %54 = vmatprep.subr.mxu0 0.0
  %55 = vmatpush1.msra.mxu0 0.0
  %56 = vmatprep.subr.mxu0 0.0
  %57 = vmatpush1.msra.mxu0 0.0
  %58 = vmatprep.subr.mxu0 0.0
  %59 = vmatpush1.msra.mxu0 0.0
  %60 = vmatprep.subr.mxu0 0.0
  %61 = vmatpush1.msra.mxu0 0.0
  %62 = vmatprep.subr.mxu0 0.0
  %63 = vmatpush1.msra.mxu0 0.0
  %64 = vmatprep.subr.mxu0 0.0
  %65 = vmatpush1.msra.mxu0 0.0
  %66 = vmatprep.subr.mxu0 0.0
  %67 = vmatpush1.msra.mxu0 0.0
  %68 = vmatprep.subr.mxu0 0.0
  %69 = vmatpush1.msra.mxu0 0.0
  %70 = vmatprep.subr.mxu0 0.0
  %71 = vmatpush1.msra.mxu0 0.0
  %72 = vmatprep.subr.mxu0 0.0
  %73 = vmatpush1.msra.mxu0 0.0
  %74 = vmatprep.subr.mxu0 0.0
  %75 = vmatpush1.msra.mxu0 0.0
  %76 = vmatprep.subr.mxu0 0.0
  %77 = vmatpush1.msra.mxu0 0.0
  %78 = vmatprep.subr.mxu0 0.0
  %79 = vmatpush1.msra.mxu0 0.0
  %80 = vmatprep.subr.mxu0 0.0
  %81 = vmatpush1.msra.mxu0 0.0
  %82 = vmatprep.subr.mxu0 0.0
  %83 = vmatpush1.msra.mxu0 0.0
  %84 = vmatprep.subr.mxu0 0.0
  %85 = vmatpush1.msra.mxu0 0.0
  %86 = vmatprep.subr.mxu0 0.0
  %87 = vmatpush1.msra.mxu0 0.0
  %88 = vmatprep.subr.mxu0 0.0
  %89 = vmatpush1.msra.mxu0 0.0
  %90 = vmatprep.subr.mxu0 0.0
  %91 = vmatpush1.msra.mxu0 0.0
  %92 = vmatprep.subr.mxu0 0.0
  %93 = vmatpush1.msra.mxu0 0.0
  %94 = vmatprep.subr.mxu0 0.0
  %95 = vmatpush1.msra.mxu0 0.0
  %96 = vmatprep.subr.mxu0 0.0
  %97 = vmatpush1.msra.mxu0 0.0
  %98 = vmatprep.mubr.f32.mxu0 0.0
  %99 = vmatmul.mubr.f32.gmra.mrb[0].mxu0 %v32
  %v100 = vpop.f32.mrb[0].mxu0
  %v101 = vadd.f32 %v29, %v100
  %v102 = vpop.f32.mrb[0].mxu0
  %103 = vdwg.mxu0
  %v104 = vmax.f32 %v101, 0.0
  %v105 = vld [vmem:[%s2] sm:$0xff]
  %v106 = vld [vmem:[%s2 + $0x8] sm:$0xff]
  %v107 = vld [vmem:[%s2 + $0x10] sm:$0xff]
  %v108 = vld [vmem:[%s2 + $0x18] sm:$0xff]
  %v109 = vld [vmem:[%s2 + $0x20] sm:$0xff]
  %v110 = vld [vmem:[%s2 + $0x28] sm:$0xff]
  %v111 = vld [vmem:[%s2 + $0x30] sm:$0xff]
  %v112 = vld [vmem:[%s2 + $0x38] sm:$0xff]
  %v113 = vld [vmem:[%s2 + $0x40] sm:$0xff]
  %v114 = vld [vmem:[%s2 + $0x48] sm:$0xff]
  %v115 = vld [vmem:[%s2 + $0x50] sm:$0xff]
  %v116 = vld [vmem:[%s2 + $0x58] sm:$0xff]
  %v117 = vld [vmem:[%s2 + $0x60] sm:$0xff]
  %v118 = vld [vmem:[%s2 + $0x68] sm:$0xff]
  %v119 = vld [vmem:[%s2 + $0x70] sm:$0xff]
  %v120 = vld [vmem:[%s2 + $0x78] sm:$0xff]
  %v121 = vlaneseq
  %v122 = vshrl.u32 %v121, 7
  %v123 = vsub.s32 1, %v122
  %v124 = vrot.slane %v23, %v123
  %125 = vmatprep.subr.mxu0 0.0
  %126 = vmatpush1.msra.mxu0 %v105
  %127 = vmatprep.subr.mxu0 0.0
  %128 = vmatpush1.msra.mxu0 %v106
  %129 = vmatprep.subr.mxu0 0.0
  %130 = vmatpush1.msra.mxu0 %v107
  %131 = vmatprep.subr.mxu0 0.0
  %132 = vmatpush1.msra.mxu0 %v108
  %133 = vmatprep.subr.mxu0 0.0
  %134 = vmatpush1.msra.mxu0 %v109
  %135 = vmatprep.subr.mxu0 0.0
  %136 = vmatpush1.msra.mxu0 %v110
  %137 = vmatprep.subr.mxu0 0.0
  %138 = vmatpush1.msra.mxu0 %v111
  %139 = vmatprep.subr.mxu0 0.0
  %140 = vmatpush1.msra.mxu0 %v112
  %141 = vmatprep.subr.mxu0 0.0
  %142 = vmatpush1.msra.mxu0 %v113
  %143 = vmatprep.subr.mxu0 0.0
  %144 = vmatpush1.msra.mxu0 %v114
  %145 = vmatprep.subr.mxu0 0.0
  %146 = vmatpush1.msra.mxu0 %v115
  %147 = vmatprep.subr.mxu0 0.0
  %148 = vmatpush1.msra.mxu0 %v116
  %149 = vmatprep.subr.mxu0 0.0
  %150 = vmatpush1.msra.mxu0 %v117
  %151 = vmatprep.subr.mxu0 0.0
  %152 = vmatpush1.msra.mxu0 %v118
  %153 = vmatprep.subr.mxu0 0.0
  %154 = vmatpush1.msra.mxu0 %v119
  %155 = vmatprep.subr.mxu0 0.0
  %156 = vmatpush1.msra.mxu0 %v120
  %157 = vmatprep.subr.mxu0 0.0
  %158 = vmatpush1.msra.mxu0 0.0
  %159 = vmatprep.subr.mxu0 0.0
  %160 = vmatpush1.msra.mxu0 0.0
  %161 = vmatprep.subr.mxu0 0.0
  %162 = vmatpush1.msra.mxu0 0.0
  %163 = vmatprep.subr.mxu0 0.0
  %164 = vmatpush1.msra.mxu0 0.0
  %165 = vmatprep.subr.mxu0 0.0
  %166 = vmatpush1.msra.mxu0 0.0
  %167 = vmatprep.subr.mxu0 0.0
  %168 = vmatpush1.msra.mxu0 0.0
  %169 = vmatprep.subr.mxu0 0.0
  %170 = vmatpush1.msra.mxu0 0.0
  %171 = vmatprep.subr.mxu0 0.0
  %172 = vmatpush1.msra.mxu0 0.0
  %173 = vmatprep.subr.mxu0 0.0
  %174 = vmatpush1.msra.mxu0 0.0
  %175 = vmatprep.subr.mxu0 0.0
  %176 = vmatpush1.msra.mxu0 0.0
  %177 = vmatprep.subr.mxu0 0.0
  %178 = vmatpush1.msra.mxu0 0.0
  %179 = vmatprep.subr.mxu0 0.0
  %180 = vmatpush1.msra.mxu0 0.0
  %181 = vmatprep.subr.mxu0 0.0
  %182 = vmatpush1.msra.mxu0 0.0
  %183 = vmatprep.subr.mxu0 0.0
  %184 = vmatpush1.msra.mxu0 0.0
  %185 = vmatprep.subr.mxu0 0.0
  %186 = vmatpush1.msra.mxu0 0.0
  %187 = vmatprep.subr.mxu0 0.0
  %188 = vmatpush1.msra.mxu0 0.0
  %189 = vmatprep.mubr.f32.mxu0 0.0
  %190 = vmatmul.mubr.f32.gmra.mrb[0].mxu0 %v104
  %v191 = vpop.f32.mrb[0].mxu0
  %v192 = vadd.f32 %v124, %v191
  %v193 = vpop.f32.mrb[0].mxu0
  %194 = vdwg.mxu0
  %v195 = vmax.f32 %v192, 0.0
  %v196 = vld [vmem:[%s3] sm:$0xff]
  %v197 = vld [vmem:[%s3 + $0x8] sm:$0xff]
  %v198 = vld [vmem:[%s3 + $0x10] sm:$0xff]
  %v199 = vld [vmem:[%s3 + $0x18] sm:$0xff]
  %v200 = vld [vmem:[%s3 + $0x20] sm:$0xff]
  %v201 = vld [vmem:[%s3 + $0x28] sm:$0xff]
  %v202 = vld [vmem:[%s3 + $0x30] sm:$0xff]
  %v203 = vld [vmem:[%s3 + $0x38] sm:$0xff]
  %v204 = vld [vmem:[%s3 + $0x40] sm:$0xff]
  %v205 = vld [vmem:[%s3 + $0x48] sm:$0xff]
  %v206 = vld [vmem:[%s3 + $0x50] sm:$0xff]
  %v207 = vld [vmem:[%s3 + $0x58] sm:$0xff]
  %v208 = vld [vmem:[%s3 + $0x60] sm:$0xff]
  %v209 = vld [vmem:[%s3 + $0x68] sm:$0xff]
  %v210 = vld [vmem:[%s3 + $0x70] sm:$0xff]
  %v211 = vld [vmem:[%s3 + $0x78] sm:$0xff]
  %v212 = vld [vmem:[%s5] sm:$0x1]
  %v214 = vlaneseq
  %v215 = vshrl.u32 %v214, 7
  %v216 = vsub.s32 0, %v215
  %v217 = vrot.slane %v212, %v216
  %219 = vmatprep.subr.mxu0 0.0
  %220 = vmatpush1.msra.mxu0 %v196
  %221 = vmatprep.subr.mxu0 0.0
  %222 = vmatpush1.msra.mxu0 %v197
  %223 = vmatprep.subr.mxu0 0.0
  %224 = vmatpush1.msra.mxu0 %v198
  %225 = vmatprep.subr.mxu0 0.0
  %226 = vmatpush1.msra.mxu0 %v199
  %227 = vmatprep.subr.mxu0 0.0
  %228 = vmatpush1.msra.mxu0 %v200
  %229 = vmatprep.subr.mxu0 0.0
  %230 = vmatpush1.msra.mxu0 %v201
  %231 = vmatprep.subr.mxu0 0.0
  %232 = vmatpush1.msra.mxu0 %v202
  %233 = vmatprep.subr.mxu0 0.0
  %234 = vmatpush1.msra.mxu0 %v203
  %235 = vmatprep.subr.mxu0 0.0
  %236 = vmatpush1.msra.mxu0 %v204
  %237 = vmatprep.subr.mxu0 0.0
  %238 = vmatpush1.msra.mxu0 %v205
  %239 = vmatprep.subr.mxu0 0.0
  %240 = vmatpush1.msra.mxu0 %v206
  %241 = vmatprep.subr.mxu0 0.0
  %242 = vmatpush1.msra.mxu0 %v207
  %243 = vmatprep.subr.mxu0 0.0
  %244 = vmatpush1.msra.mxu0 %v208
  %245 = vmatprep.subr.mxu0 0.0
  %246 = vmatpush1.msra.mxu0 %v209
  %247 = vmatprep.subr.mxu0 0.0
  %248 = vmatpush1.msra.mxu0 %v210
  %249 = vmatprep.subr.mxu0 0.0
  %250 = vmatpush1.msra.mxu0 %v211
  %251 = vmatprep.subr.mxu0 0.0
  %252 = vmatpush1.msra.mxu0 0.0
  %253 = vmatprep.subr.mxu0 0.0
  %254 = vmatpush1.msra.mxu0 0.0
  %255 = vmatprep.subr.mxu0 0.0
  %256 = vmatpush1.msra.mxu0 0.0
  %257 = vmatprep.subr.mxu0 0.0
  %258 = vmatpush1.msra.mxu0 0.0
  %259 = vmatprep.subr.mxu0 0.0
  %260 = vmatpush1.msra.mxu0 0.0
  %261 = vmatprep.subr.mxu0 0.0
  %262 = vmatpush1.msra.mxu0 0.0
  %263 = vmatprep.subr.mxu0 0.0
  %264 = vmatpush1.msra.mxu0 0.0
  %265 = vmatprep.subr.mxu0 0.0
  %266 = vmatpush1.msra.mxu0 0.0
  %267 = vmatprep.subr.mxu0 0.0
  %268 = vmatpush1.msra.mxu0 0.0
  %269 = vmatprep.subr.mxu0 0.0
  %270 = vmatpush1.msra.mxu0 0.0
  %271 = vmatprep.subr.mxu0 0.0
  %272 = vmatpush1.msra.mxu0 0.0
  %273 = vmatprep.subr.mxu0 0.0
  %274 = vmatpush1.msra.mxu0 0.0
  %275 = vmatprep.subr.mxu0 0.0
  %276 = vmatpush1.msra.mxu0 0.0
  %277 = vmatprep.subr.mxu0 0.0
  %278 = vmatpush1.msra.mxu0 0.0
  %279 = vmatprep.subr.mxu0 0.0
  %280 = vmatpush1.msra.mxu0 0.0
  %281 = vmatprep.subr.mxu0 0.0
  %282 = vmatpush1.msra.mxu0 0.0
  %283 = vmatprep.mubr.f32.mxu0 0.0
  %284 = vmatmul.mubr.f32.gmra.mrb[0].mxu0 %v195
  %v285 = vpop.f32.mrb[0].mxu0
  %v286 = vadd.f32 %v217, %v285
  %v287 = vpop.f32.mrb[0].mxu0
  %288 = vdwg.mxu0
  %v289 = vsub.f32 0.0, %v286
  %v290 = vmul.f32 %v289, 1.442695
  %v291 = vpow.pop %v290
  %v292 = vadd.f32 %v291, 1.0
  %v293 = vrcp.pop %v292
  %v294 = vmul.f32 1.0, %v293
  %295 = vst.msk [vmem:[%s6] sm:$0xff] %vm30, %v294
  // Predicated region
  $region26: #{static_cond_controller_forward.1} parent=0 // pred_check
    _
  $region27: #{static_cond_controller_forward.1} parent=0 // pred_check_branch
    %297 = sbr.rel (0) target = $region29
  $region28: #{static_cond_controller_forward.1} parent=0 // pred_region
    _
  $region29: #{static_cond_controller_forward.1} parent=0 // pred_fallthru
    _
  // Predicated region
  $region30: #{static_cond_controller_forward.1} parent=0 // pred_check
    _
  $region31: #{static_cond_controller_forward.1} parent=0 // pred_check_branch
    %299 = sbr.rel (0) target = $region33
  $region32: #{static_cond_controller_forward.1} parent=0 // pred_region
    _
  $region33: #{static_cond_controller_forward.1} parent=0 // pred_fallthru
    _

</llo_original>
